<compile_context>
chip_gen: v7x
topology: tpu7x:2x2x1
jax: 0.10.0
libtpu: 0.0.40
codegen_flags: <defaults>
</compile_context>

<pallas_src>
import functools
import math

import jax
import jax.numpy as jnp
from jax.experimental import pallas as pl
from jax.experimental.pallas import tpu as pltpu


def _round_up(x, m):
    return (x + m - 1) // m * m


def _tpu_generation_info():
    """Return (tensorcores_per_device, physical_vmem_bytes) with safe fallbacks."""
    vmem_cap = 64 * 1024 * 1024  # conservative fallback: v7x per-TC minimum
    n_tc = 1
    try:
        vmem_cap = int(pltpu.get_tpu_info().vmem_capacity_bytes)
    except Exception:
        pass
    try:
        kind = jax.devices()[0].device_kind.lower()
        # Megacore-style devices expose >1 TensorCore per device (v4*, v7x).
        if ("v4" in kind) or ("v7" in kind) or ("7x" in kind):
            n_tc = 2
    except Exception:
        pass
    return n_tc, vmem_cap


def actor_forward_kernel(
    x_ref,            # (block_b, S_pad)        f32
    w1_ref, b1_ref,   # (S_pad, H1), (1, H1)    f32
    w2_ref, b2_ref,   # (H1, H2),    (1, H2)    f32
    w3_ref, b3_ref,   # (H2, OUT_PAD), (1, OUT_PAD)  f32 (zero-padded head)
    out_ref,          # (block_b, OUT_PAD)      lane-dense slab: [mu | std | pad]
    *, action_dim, compute_dtype,
):
    cd = compute_dtype  # f32 (default) or bf16 for the MXU passes

    x = x_ref[...].astype(cd)

    # hidden layer 1: Linear + ReLU  (MXU matmul, f32 accumulate; bias/relu in f32)
    h1 = jnp.dot(x, w1_ref[...].astype(cd), preferred_element_type=jnp.float32)
    h1 = jnp.maximum(h1 + b1_ref[...], 0.0)

    # hidden layer 2: Linear + ReLU
    h2 = jnp.dot(h1.astype(cd), w2_ref[...].astype(cd),
                 preferred_element_type=jnp.float32)
    h2 = jnp.maximum(h2 + b2_ref[...], 0.0)

    # output head: Linear -> (block_b, OUT_PAD); padded columns are exact zeros.
    out = jnp.dot(h2.astype(cd), w3_ref[...].astype(cd),
                  preferred_element_type=jnp.float32)
    out = out + b3_ref[...]

    # No cross-lane slicing: lane-index select applies exp(clip(...)) to the
    # std (and padded) lanes only; mu lanes pass through. EUP work on the extra
    # lanes is free (separate bundle slot), padded lanes are discarded by the
    # wrapper slice.
    lane = jax.lax.broadcasted_iota(jnp.int32, out.shape, 1)
    std_all = jnp.exp(jnp.clip(out, -20.0, 2.0))
    out_ref[...] = jnp.where(lane < action_dim, out, std_all).astype(out_ref.dtype)


def actor_forward(state, params, action_dim, *, max_block_b=2048,
                  compute_dtype=jnp.float32):
    """Fused Actor forward. state: (B, state_dim) f32 -> (mu, std), each (B, A)."""
    w1, b1, w2, b2, w3, b3 = params
    B, S = state.shape
    H1 = w1.shape[1]
    H2 = w2.shape[1]
    two_a = w3.shape[1]
    assert two_a == 2 * action_dim

    # ---- lane-dense padding (zero-pad => numerics unchanged) ----------------
    S_pad = _round_up(S, 128)        # dense input block / dense K of matmul #1
    out_pad = _round_up(two_a, 128)  # dense output slab: unmasked stores + DMA
    if S_pad != S:
        state = jnp.pad(state, ((0, 0), (0, S_pad - S)))
        w1 = jnp.pad(w1, ((0, S_pad - S), (0, 0)))
    if out_pad != two_a:
        w3 = jnp.pad(w3, ((0, 0), (0, out_pad - two_a)))
        b3 = jnp.pad(b3, ((0, 0), (0, out_pad - two_a)))

    # ---- grid / block choice per TPU generation -----------------------------
    n_tc, vmem_cap = _tpu_generation_info()
    B_r8 = _round_up(B, 8)
    n_steps = max(1, pl.cdiv(B_r8, max_block_b))
    if n_tc > 1:
        # v7x megacore: even number of steps >= 2 so both TCs get equal work.
        n_steps = max(2, 2 * pl.cdiv(n_steps, 2))
    block_b = _round_up(pl.cdiv(B_r8, n_steps), 8)
    B_pad = n_steps * block_b
    if B_pad != B:
        state = jnp.pad(state, ((0, B_pad - B), (0, 0)))
    grid = (n_steps,)

    # ---- advisory cost estimate ---------------------------------------------
    w_elems = S_pad * H1 + H1 + H1 * H2 + H2 + H2 * out_pad + out_pad
    flops = 2 * B_pad * (S_pad * H1 + H1 * H2 + H2 * out_pad)
    transcendentals = B_pad * out_pad
    bytes_accessed = 4 * (B_pad * S_pad + w_elems + B_pad * out_pad)

    # ---- scoped-VMEM budget (per grid step, f32 bytes) -----------------------
    # inputs/outputs double-buffered by the auto-pipeliner, weights counted 2x
    # to be safe, hidden activations live once.
    est_vmem = (
        2 * 4 * block_b * (S_pad + out_pad)
        + 2 * 4 * w_elems
        + 4 * block_b * (H1 + H2)
    )
    vmem_limit_bytes = None
    if est_vmem > 12 * 1024 * 1024:  # would be tight vs v5e's 16 MiB default
        vmem_limit_bytes = min(est_vmem + (4 << 20), (3 * vmem_cap) // 4)

    compiler_params = pltpu.CompilerParams(
        dimension_semantics=("parallel",),  # shards the batch grid on v7x
        vmem_limit_bytes=vmem_limit_bytes,
    )

    # Weights/biases stay VMEM-resident across grid steps (constant index_map).
    def _const2d(a):
        return pl.BlockSpec(a.shape, lambda i: (0, 0))

    kernel = functools.partial(
        actor_forward_kernel, action_dim=action_dim, compute_dtype=compute_dtype
    )

    out = pl.pallas_call(
        kernel,
        out_shape=jax.ShapeDtypeStruct((B_pad, out_pad), jnp.float32),
        grid=grid,
        in_specs=[
            pl.BlockSpec((block_b, S_pad), lambda i: (i, 0)),
            _const2d(w1), _const2d(b1),
            _const2d(w2), _const2d(b2),
            _const2d(w3), _const2d(b3),
        ],
        out_specs=pl.BlockSpec((block_b, out_pad), lambda i: (i, 0)),
        compiler_params=compiler_params,
        cost_estimate=pl.CostEstimate(
            flops=int(flops),
            transcendentals=int(transcendentals),
            bytes_accessed=int(bytes_accessed),
        ),
    )(state, w1, b1, w2, b2, w3, b3)

    out = out[:B, :two_a]
    mu = out[:, :action_dim]
    std = out[:, action_dim:]
    return mu, std


# ----------------------------- init & reference ------------------------------

def xavier_uniform(key, fan_in, fan_out, dtype=jnp.float32):
    # matches torch.nn.init.xavier_uniform_ with gain=1
    limit = math.sqrt(6.0 / (fan_in + fan_out))
    return jax.random.uniform(
        key, (fan_in, fan_out), dtype=dtype, minval=-limit, maxval=limit
    )


def init_actor_params(key, state_dim, hidden_dim, action_dim):
    dims = [state_dim] + list(hidden_dim)
    keys = jax.random.split(key, len(dims))  # one per linear (incl. head)
    params = []
    for i, (din, dout) in enumerate(zip(dims[:-1], dims[1:])):
        w = xavier_uniform(keys[i], din, dout)
        b = jnp.zeros((1, dout), jnp.float32)  # constant_(bias, 0)
        params += [w, b]
    w = xavier_uniform(keys[-1], dims[-1], 2 * action_dim)
    b = jnp.zeros((1, 2 * action_dim), jnp.float32)
    params += [w, b]
    return tuple(params)


def actor_forward_ref(state, params, action_dim):
    """Pure-JAX reference for correctness checking."""
    w1, b1, w2, b2, w3, b3 = params
    hp = jax.lax.Precision.HIGHEST
    h1 = jnp.maximum(jnp.dot(state, w1, precision=hp) + b1, 0.0)
    h2 = jnp.maximum(jnp.dot(h1, w2, precision=hp) + b2, 0.0)
    out = jnp.dot(h2, w3, precision=hp) + b3
    mu = out[:, :action_dim]
    std = jnp.exp(jnp.clip(out[:, action_dim:], -20.0, 2.0))
    return mu, std


# TODO(synk): get_action_log_prob / get_action (Normal.rsample + tanh squash)
# are stochastic sampling utilities outside forward(); not implemented here.

if __name__ == "__main__":
    # Small shapes consistent with the module: hidden_dim defaults to [256, 256]
    # (MXU-friendly); odd state/action dims exercise the lane-dense padding.
    batch = 64
    state_dim = 12
    hidden_dim = [256, 256]
    action_dim = 3

    key = jax.random.PRNGKey(0)
    k_params, k_state = jax.random.split(key)

    params = init_actor_params(k_params, state_dim, hidden_dim, action_dim)
    state = jax.random.normal(k_state, (batch, state_dim), dtype=jnp.float32)

    # f32 path (default) — must match the HIGHEST-precision reference tightly.
    mu, std = actor_forward(state, params, action_dim)
    mu, std = jax.block_until_ready(mu), jax.block_until_ready(std)

    mu_ref, std_ref = actor_forward_ref(state, params, action_dim)
    assert mu.shape == (batch, action_dim) and std.shape == (batch, action_dim)
    assert jnp.allclose(mu, mu_ref, atol=1e-4, rtol=1e-4)
    assert jnp.allclose(std, std_ref, atol=1e-4, rtol=1e-4)
    assert bool(jnp.all(std > 0))

    # Optional bf16-matmul path (f32 accumulate) — loose sanity check only.
    mu_bf, std_bf = actor_forward(state, params, action_dim,
                                  compute_dtype=jnp.bfloat16)
    mu_bf, std_bf = jax.block_until_ready(mu_bf), jax.block_until_ready(std_bf)
    assert mu_bf.shape == (batch, action_dim) and std_bf.shape == (batch, action_dim)
    assert bool(jnp.all(jnp.isfinite(mu_bf))) and bool(jnp.all(std_bf > 0))
    assert jnp.allclose(mu_bf, mu_ref, atol=5e-2, rtol=5e-2)
    assert jnp.allclose(std_bf, std_ref, atol=5e-2, rtol=5e-2)

    print("KERNEL_OK")
</pallas_src>

<mosaic_0001>
module attributes {stable_mosaic.version = 11 : i64} {
  func.func @actor_forward_kernel(%arg0: i32, %arg1: memref<64x128xf32, #tpu.memory_space<vmem>>, %arg2: memref<128x256xf32, #tpu.memory_space<vmem>>, %arg3: memref<1x256xf32, #tpu.memory_space<vmem>>, %arg4: memref<256x256xf32, #tpu.memory_space<vmem>>, %arg5: memref<1x256xf32, #tpu.memory_space<vmem>>, %arg6: memref<256x128xf32, #tpu.memory_space<vmem>>, %arg7: memref<1x128xf32, #tpu.memory_space<vmem>>, %arg8: memref<64x128xf32, #tpu.memory_space<vmem>>) attributes {dimension_semantics = [#tpu.dimension_semantics<parallel>], iteration_bounds = array<i64: 1>, scalar_prefetch = 0 : i64, scratch_operands = 0 : i64, tpu.core_type = #tpu.core_type<tc>, window_params = [{transform_indices = @transform_0, window_bounds = array<i64: 64, 128>}, {pipeline_mode = #tpu.pipeline_mode<synchronous>, transform_indices = @transform_1, window_bounds = array<i64: 128, 256>}, {pipeline_mode = #tpu.pipeline_mode<synchronous>, transform_indices = @transform_2, window_bounds = array<i64: 1, 256>}, {pipeline_mode = #tpu.pipeline_mode<synchronous>, transform_indices = @transform_3, window_bounds = array<i64: 256, 256>}, {pipeline_mode = #tpu.pipeline_mode<synchronous>, transform_indices = @transform_4, window_bounds = array<i64: 1, 256>}, {pipeline_mode = #tpu.pipeline_mode<synchronous>, transform_indices = @transform_5, window_bounds = array<i64: 256, 128>}, {pipeline_mode = #tpu.pipeline_mode<synchronous>, transform_indices = @transform_6, window_bounds = array<i64: 1, 128>}, {transform_indices = @transform_7, window_bounds = array<i64: 64, 128>}]} {
    %c0 = arith.constant 0 : index
    %c0_0 = arith.constant 0 : index
    %0 = vector.load %arg1[%c0, %c0_0] : memref<64x128xf32, #tpu.memory_space<vmem>>, vector<64x128xf32>
    %c0_1 = arith.constant 0 : index
    %c0_2 = arith.constant 0 : index
    %1 = vector.load %arg2[%c0_1, %c0_2] : memref<128x256xf32, #tpu.memory_space<vmem>>, vector<128x256xf32>
    %cst = arith.constant dense<0.000000e+00> : vector<64x256xf32>
    %2 = tpu.matmul %0, %1, %cst {dimension_numbers = #tpu.dot_dimension_numbers<[1], [0], [0], [1], [0, 0, 1, 1], [], []>} : vector<64x128xf32>, vector<128x256xf32>, vector<64x256xf32> -> vector<64x256xf32>
    %c0_3 = arith.constant 0 : index
    %c0_4 = arith.constant 0 : index
    %3 = vector.load %arg3[%c0_3, %c0_4] : memref<1x256xf32, #tpu.memory_space<vmem>>, vector<1x256xf32>
    %4 = vector.broadcast %3 : vector<1x256xf32> to vector<64x256xf32>
    %5 = arith.addf %2, %4 : vector<64x256xf32>
    %cst_5 = arith.constant 0.000000e+00 : f32
    %6 = vector.broadcast %cst_5 : f32 to vector<64x256xf32>
    %7 = arith.maximumf %5, %6 : vector<64x256xf32>
    %c0_6 = arith.constant 0 : index
    %c0_7 = arith.constant 0 : index
    %8 = vector.load %arg4[%c0_6, %c0_7] : memref<256x256xf32, #tpu.memory_space<vmem>>, vector<256x256xf32>
    %cst_8 = arith.constant dense<0.000000e+00> : vector<64x256xf32>
    %9 = tpu.matmul %7, %8, %cst_8 {dimension_numbers = #tpu.dot_dimension_numbers<[1], [0], [0], [1], [0, 0, 1, 1], [], []>} : vector<64x256xf32>, vector<256x256xf32>, vector<64x256xf32> -> vector<64x256xf32>
    %c0_9 = arith.constant 0 : index
    %c0_10 = arith.constant 0 : index
    %10 = vector.load %arg5[%c0_9, %c0_10] : memref<1x256xf32, #tpu.memory_space<vmem>>, vector<1x256xf32>
    %11 = vector.broadcast %10 : vector<1x256xf32> to vector<64x256xf32>
    %12 = arith.addf %9, %11 : vector<64x256xf32>
    %cst_11 = arith.constant 0.000000e+00 : f32
    %13 = vector.broadcast %cst_11 : f32 to vector<64x256xf32>
    %14 = arith.maximumf %12, %13 : vector<64x256xf32>
    %c0_12 = arith.constant 0 : index
    %c0_13 = arith.constant 0 : index
    %15 = vector.load %arg6[%c0_12, %c0_13] : memref<256x128xf32, #tpu.memory_space<vmem>>, vector<256x128xf32>
    %cst_14 = arith.constant dense<0.000000e+00> : vector<64x128xf32>
    %16 = tpu.matmul %14, %15, %cst_14 {dimension_numbers = #tpu.dot_dimension_numbers<[1], [0], [0], [1], [0, 0, 1, 1], [], []>} : vector<64x256xf32>, vector<256x128xf32>, vector<64x128xf32> -> vector<64x128xf32>
    %c0_15 = arith.constant 0 : index
    %c0_16 = arith.constant 0 : index
    %17 = vector.load %arg7[%c0_15, %c0_16] : memref<1x128xf32, #tpu.memory_space<vmem>>, vector<1x128xf32>
    %18 = vector.broadcast %17 : vector<1x128xf32> to vector<64x128xf32>
    %19 = arith.addf %16, %18 : vector<64x128xf32>
    %20 = tpu.iota {dimensions = array<i32: 1>} : vector<64x128xi32>
    %cst_17 = arith.constant -2.000000e+01 : f32
    %cst_18 = arith.constant 2.000000e+00 : f32
    %21 = vector.broadcast %cst_17 : f32 to vector<64x128xf32>
    %22 = arith.maximumf %21, %19 : vector<64x128xf32>
    %23 = vector.broadcast %cst_18 : f32 to vector<64x128xf32>
    %24 = arith.minimumf %23, %22 : vector<64x128xf32>
    %25 = math.exp %24 : vector<64x128xf32>
    %c3_i32 = arith.constant 3 : i32
    %26 = vector.broadcast %c3_i32 : i32 to vector<64x128xi32>
    %27 = arith.cmpi slt, %20, %26 : vector<64x128xi32>
    %28 = arith.select %27, %19, %25 : vector<64x128xi1>, vector<64x128xf32>
    %c0_19 = arith.constant 0 : index
    %c0_20 = arith.constant 0 : index
    %29 = vector.load %arg8[%c0_19, %c0_20] : memref<64x128xf32, #tpu.memory_space<vmem>>, vector<64x128xf32>
    tpu.vector_store %arg8[%c0_19, %c0_20], %28 {strides = array<i32>} : memref<64x128xf32, #tpu.memory_space<vmem>>, vector<64x128xf32>,
    return
  }
  func.func @transform_0(%arg0: i32) -> (i32, i32) {
    %c0_i32 = arith.constant 0 : i32
    %c0_i32_0 = arith.constant 0 : i32
    return %arg0, %c0_i32 : i32, i32
  }
  func.func @transform_1(%arg0: i32) -> (i32, i32) {
    %c0_i32 = arith.constant 0 : i32
    %c0_i32_0 = arith.constant 0 : i32
    %c0_i32_1 = arith.constant 0 : i32
    return %c0_i32, %c0_i32_0 : i32, i32
  }
  func.func @transform_2(%arg0: i32) -> (i32, i32) {
    %c0_i32 = arith.constant 0 : i32
    %c0_i32_0 = arith.constant 0 : i32
    %c0_i32_1 = arith.constant 0 : i32
    return %c0_i32, %c0_i32_0 : i32, i32
  }
  func.func @transform_3(%arg0: i32) -> (i32, i32) {
    %c0_i32 = arith.constant 0 : i32
    %c0_i32_0 = arith.constant 0 : i32
    %c0_i32_1 = arith.constant 0 : i32
    return %c0_i32, %c0_i32_0 : i32, i32
  }
  func.func @transform_4(%arg0: i32) -> (i32, i32) {
    %c0_i32 = arith.constant 0 : i32
    %c0_i32_0 = arith.constant 0 : i32
    %c0_i32_1 = arith.constant 0 : i32
    return %c0_i32, %c0_i32_0 : i32, i32
  }
  func.func @transform_5(%arg0: i32) -> (i32, i32) {
    %c0_i32 = arith.constant 0 : i32
    %c0_i32_0 = arith.constant 0 : i32
    %c0_i32_1 = arith.constant 0 : i32
    return %c0_i32, %c0_i32_0 : i32, i32
  }
  func.func @transform_6(%arg0: i32) -> (i32, i32) {
    %c0_i32 = arith.constant 0 : i32
    %c0_i32_0 = arith.constant 0 : i32
    %c0_i32_1 = arith.constant 0 : i32
    return %c0_i32, %c0_i32_0 : i32, i32
  }
  func.func @transform_7(%arg0: i32) -> (i32, i32) {
    %c0_i32 = arith.constant 0 : i32
    %c0_i32_0 = arith.constant 0 : i32
    return %arg0, %c0_i32 : i32, i32
  }
}

</mosaic_0001>

<llo_original>
// kernel: tpu_custom_call.1
$region0: #{tpu_custom_call.1}
  #allocation0 [shape = 'u32[]', space=smem, size = 0x4, offset = 0x4, fixed_abs, tag = 'smem constant byte address 0x4 - core index']
  #allocation1 [shape = 'u32[144,128]{1,0:T(1,128)}', space=vmem, size = 0x12000, scoped, tag = 'internal scratch']
  %s0 = inlined_call_operand.hbm [shape: f32[64,128], index: 0, kind: input, shape index: {}]
  %s1 = inlined_call_operand.hbm [shape: f32[128,256], index: 1, kind: input, shape index: {}]
  %s2 = inlined_call_operand.vmem [shape: f32[1,256], index: 2, kind: input, shape index: {}]
  %s3 = inlined_call_operand.hbm [shape: f32[256,256], index: 3, kind: input, shape index: {}]
  %s4 = inlined_call_operand.vmem [shape: f32[1,256], index: 4, kind: input, shape index: {}]
  %s5 = inlined_call_operand.hbm [shape: f32[256,128], index: 5, kind: input, shape index: {}]
  %s6 = inlined_call_operand.vmem [shape: f32[1,128], index: 6, kind: input, shape index: {}]
  %s7 = inlined_call_operand.hbm [shape: f32[64,128], index: 7, kind: output, shape index: {}]
  %s8 = sld [smem:[#allocation0]]
  $region54: #{tpu_custom_call.1} parent=0
    _
  %s10 = ssub.s32 1, %s8
  %s11 = scalar_select 0, %s10, %s8
  $region1: #{tpu_custom_call.1} parent=0
    #allocation2 [shape = 'u8[32768]{0}', space=vmem, size = 0x8000, scoped, tag = 'input window, operand 0, single buffered']
    #allocation3 [shape = 's32[1]{0}', space=sflag, size = 0x4, scoped, tag = 'scoped memory for tpu_custom_call.1']
    #allocation4 [shape = 's32[1]{0}', space=sflag, size = 0x4, scoped, tag = 'scoped memory for tpu_custom_call.1']
    #allocation5 [shape = 'u8[131072]{0}', space=vmem, size = 0x20000, scoped, tag = 'input window, operand 1, single buffered']
    #allocation6 [shape = 's32[1]{0}', space=sflag, size = 0x4, scoped, tag = 'scoped memory for tpu_custom_call.1']
    #allocation7 [shape = 'u8[262144]{0}', space=vmem, size = 0x40000, scoped, tag = 'input window, operand 3, single buffered']
    #allocation8 [shape = 'u8[131072]{0}', space=vmem, size = 0x20000, scoped, tag = 'input window, operand 5, single buffered']
    #allocation9 [shape = 's32[1]{0}', space=sflag, size = 0x4, scoped, tag = 'scoped memory for tpu_custom_call.1']
    #allocation10 [shape = 'u8[32768]{0}', space=vmem, size = 0x8000, scoped, tag = 'output window, operand 0, single buffered']
    %12 = vsyncpa [#allocation3], 0
    %13 = vsyncpa [#allocation6], 0
    %14 = vsyncpa [#allocation9], 0
    %15 = vsyncpa [#allocation4], 0
    // Predicated region
    $region2: #{tpu_custom_call.1} parent=1 // pred_check
      _
    $region3: #{tpu_custom_call.1} parent=1 // pred_check_branch
      %17 = sbr.rel (0) target = $region5
    $region4: #{tpu_custom_call.1} parent=1 // pred_region
      %s19 = ssub.s32 1024, 1024
      %20 = vsyncadd [#allocation3], %s19
      %s21 = sshll.u32 [#allocation2], 4
      %s22 = int_to_ptr.vmem [resolvable:$true] %s21
      %27 = dma.hbm_to_vmem [thread:$0]  %s0, 1024, %s22, [#allocation3], 128, 128, 8
    $region5: #{tpu_custom_call.1} parent=1 // pred_fallthru
      _
    // Predicated region
    $region6: #{tpu_custom_call.1} parent=1 // pred_check
      _
    $region7: #{tpu_custom_call.1} parent=1 // pred_check_branch
      %29 = sbr.rel (0) target = $region9
    $region8: #{tpu_custom_call.1} parent=1 // pred_region
      %s31 = ssub.s32 4096, 4096
      %32 = vsyncadd [#allocation6], %s31
      %s33 = sshll.u32 [#allocation5], 4
      %s34 = int_to_ptr.vmem [resolvable:$true] %s33
      %39 = dma.hbm_to_vmem [thread:$0]  %s1, 4096, %s34, [#allocation6], 256, 256, 16
    $region9: #{tpu_custom_call.1} parent=1 // pred_fallthru
      _
    // Predicated region
    $region10: #{tpu_custom_call.1} parent=1 // pred_check
      _
    $region11: #{tpu_custom_call.1} parent=1 // pred_check_branch
      %41 = sbr.rel (0) target = $region13
    $region12: #{tpu_custom_call.1} parent=1 // pred_region
      _
    $region13: #{tpu_custom_call.1} parent=1 // pred_fallthru
      _
    // Predicated region
    $region14: #{tpu_custom_call.1} parent=1 // pred_check
      _
    $region15: #{tpu_custom_call.1} parent=1 // pred_check_branch
      %43 = sbr.rel (0) target = $region17
    $region16: #{tpu_custom_call.1} parent=1 // pred_region
      %s45 = ssub.s32 8192, 8192
      %46 = vsyncadd [#allocation6], %s45
      %s47 = sshll.u32 [#allocation7], 4
      %s48 = int_to_ptr.vmem [resolvable:$true] %s47
      %53 = dma.hbm_to_vmem [thread:$0]  %s3, 8192, %s48, [#allocation6], 256, 256, 16
    $region17: #{tpu_custom_call.1} parent=1 // pred_fallthru
      _
    // Predicated region
    $region18: #{tpu_custom_call.1} parent=1 // pred_check
      _
    $region19: #{tpu_custom_call.1} parent=1 // pred_check_branch
      %55 = sbr.rel (0) target = $region21
    $region20: #{tpu_custom_call.1} parent=1 // pred_region
      _
    $region21: #{tpu_custom_call.1} parent=1 // pred_fallthru
      _
    // Predicated region
    $region22: #{tpu_custom_call.1} parent=1 // pred_check
      _
    $region23: #{tpu_custom_call.1} parent=1 // pred_check_branch
      %57 = sbr.rel (0) target = $region25
    $region24: #{tpu_custom_call.1} parent=1 // pred_region
      %s59 = ssub.s32 4096, 4096
      %60 = vsyncadd [#allocation9], %s59
      %s61 = sshll.u32 [#allocation8], 4
      %s62 = int_to_ptr.vmem [resolvable:$true] %s61
      %67 = dma.hbm_to_vmem [thread:$0]  %s5, 4096, %s62, [#allocation9], 128, 128, 8
    $region25: #{tpu_custom_call.1} parent=1 // pred_fallthru
      _
    // Predicated region
    $region26: #{tpu_custom_call.1} parent=1 // pred_check
      _
    $region27: #{tpu_custom_call.1} parent=1 // pred_check_branch
      %69 = sbr.rel (0) target = $region29
    $region28: #{tpu_custom_call.1} parent=1 // pred_region
      _
    $region29: #{tpu_custom_call.1} parent=1 // pred_fallthru
      _
    // Predicated region
    $region30: #{tpu_custom_call.1} parent=1 // pred_check
      _
    $region31: #{tpu_custom_call.1} parent=1 // pred_check_branch
      %71 = sbr.rel (0) target = $region33
    $region32: #{tpu_custom_call.1} parent=1 // pred_region
      %72 = dma.done [#allocation3], 1024
    $region33: #{tpu_custom_call.1} parent=1 // pred_fallthru
      _
    // Predicated region
    $region34: #{tpu_custom_call.1} parent=1 // pred_check
      _
    $region35: #{tpu_custom_call.1} parent=1 // pred_check_branch
      %74 = sbr.rel (0) target = $region37
    $region36: #{tpu_custom_call.1} parent=1 // pred_region
      %75 = dma.done [#allocation6], 4096
    $region37: #{tpu_custom_call.1} parent=1 // pred_fallthru
      _
    // Predicated region
    $region38: #{tpu_custom_call.1} parent=1 // pred_check
      _
    $region39: #{tpu_custom_call.1} parent=1 // pred_check_branch
      %77 = sbr.rel (0) target = $region41
    $region40: #{tpu_custom_call.1} parent=1 // pred_region
      %78 = dma.done [#allocation6], 8192
    $region41: #{tpu_custom_call.1} parent=1 // pred_fallthru
      _
    // Predicated region
    $region42: #{tpu_custom_call.1} parent=1 // pred_check
      _
    $region43: #{tpu_custom_call.1} parent=1 // pred_check_branch
      %80 = sbr.rel (0) target = $region45
    $region44: #{tpu_custom_call.1} parent=1 // pred_region
      %81 = dma.done [#allocation9], 4096
    $region45: #{tpu_custom_call.1} parent=1 // pred_fallthru
      _
    %v82 = vld [vmem:[#allocation2] sm:$0xff]
    %v83 = vld [vmem:[#allocation2 + $0x8] sm:$0xff]
    %v84 = vld [vmem:[#allocation2 + $0x10] sm:$0xff]
    %v85 = vld [vmem:[#allocation2 + $0x18] sm:$0xff]
    %v86 = vld [vmem:[#allocation2 + $0x20] sm:$0xff]
    %v87 = vld [vmem:[#allocation2 + $0x28] sm:$0xff]
    %v88 = vld [vmem:[#allocation2 + $0x30] sm:$0xff]
    %v89 = vld [vmem:[#allocation2 + $0x38] sm:$0xff]
    %v90 = vld [vmem:[#allocation5] sm:$0xff]
    %v91 = vld [vmem:[#allocation5 + $0x8] sm:$0xff]
    %v92 = vld [vmem:[#allocation5 + $0x10] sm:$0xff]
    %v93 = vld [vmem:[#allocation5 + $0x18] sm:$0xff]
    %v94 = vld [vmem:[#allocation5 + $0x20] sm:$0xff]
    %v95 = vld [vmem:[#allocation5 + $0x28] sm:$0xff]
    %v96 = vld [vmem:[#allocation5 + $0x30] sm:$0xff]
    %v97 = vld [vmem:[#allocation5 + $0x38] sm:$0xff]
    %v98 = vld [vmem:[#allocation5 + $0x40] sm:$0xff]
    %v99 = vld [vmem:[#allocation5 + $0x48] sm:$0xff]
    %v100 = vld [vmem:[#allocation5 + $0x50] sm:$0xff]
    %v101 = vld [vmem:[#allocation5 + $0x58] sm:$0xff]
    %v102 = vld [vmem:[#allocation5 + $0x60] sm:$0xff]
    %v103 = vld [vmem:[#allocation5 + $0x68] sm:$0xff]
    %v104 = vld [vmem:[#allocation5 + $0x70] sm:$0xff]
    %v105 = vld [vmem:[#allocation5 + $0x78] sm:$0xff]
    %v106 = vld [vmem:[#allocation5 + $0x80] sm:$0xff]
    %v107 = vld [vmem:[#allocation5 + $0x88] sm:$0xff]
    %v108 = vld [vmem:[#allocation5 + $0x90] sm:$0xff]
    %v109 = vld [vmem:[#allocation5 + $0x98] sm:$0xff]
    %v110 = vld [vmem:[#allocation5 + $0xa0] sm:$0xff]
    %v111 = vld [vmem:[#allocation5 + $0xa8] sm:$0xff]
    %v112 = vld [vmem:[#allocation5 + $0xb0] sm:$0xff]
    %v113 = vld [vmem:[#allocation5 + $0xb8] sm:$0xff]
    %v114 = vld [vmem:[#allocation5 + $0xc0] sm:$0xff]
    %v115 = vld [vmem:[#allocation5 + $0xc8] sm:$0xff]
    %v116 = vld [vmem:[#allocation5 + $0xd0] sm:$0xff]
    %v117 = vld [vmem:[#allocation5 + $0xd8] sm:$0xff]
    %v118 = vld [vmem:[#allocation5 + $0xe0] sm:$0xff]
    %v119 = vld [vmem:[#allocation5 + $0xe8] sm:$0xff]
    %v120 = vld [vmem:[#allocation5 + $0xf0] sm:$0xff]
    %v121 = vld [vmem:[#allocation5 + $0xf8] sm:$0xff]
    %v122 = vld [vmem:[%s2] sm:$0x3]
    %v124 = vlaneseq
    %v125 = vshrl.u32 %v124, 7
    %v126 = vsub.s32 0, %v125
    %v127 = vrot.slane %v122, %v126
    %v128 = vlaneseq
    %v129 = vshrl.u32 %v128, 7
    %v130 = vsub.s32 1, %v129
    %v131 = vrot.slane %v122, %v130
    %134 = vmatprep.subr.mxu0 %v91
    %135 = vmatpush1.msra.mxu0 %v90
    %136 = vmatprep.subr.mxu0 %v93
    %137 = vmatpush1.msra.mxu0 %v92
    %138 = vmatprep.subr.mxu0 %v95
    %139 = vmatpush1.msra.mxu0 %v94
    %140 = vmatprep.subr.mxu0 %v97
    %141 = vmatpush1.msra.mxu0 %v96
    %142 = vmatprep.subr.mxu0 %v99
    %143 = vmatpush1.msra.mxu0 %v98
    %144 = vmatprep.subr.mxu0 %v101
    %145 = vmatpush1.msra.mxu0 %v100
    %146 = vmatprep.subr.mxu0 %v103
    %147 = vmatpush1.msra.mxu0 %v102
    %148 = vmatprep.subr.mxu0 %v105
    %149 = vmatpush1.msra.mxu0 %v104
    %150 = vmatprep.subr.mxu0 %v107
    %151 = vmatpush1.msra.mxu0 %v106
    %152 = vmatprep.subr.mxu0 %v109
    %153 = vmatpush1.msra.mxu0 %v108
    %154 = vmatprep.subr.mxu0 %v111
    %155 = vmatpush1.msra.mxu0 %v110
    %156 = vmatprep.subr.mxu0 %v113
    %157 = vmatpush1.msra.mxu0 %v112
    %158 = vmatprep.subr.mxu0 %v115
    %159 = vmatpush1.msra.mxu0 %v114
    %160 = vmatprep.subr.mxu0 %v117
    %161 = vmatpush1.msra.mxu0 %v116
    %162 = vmatprep.subr.mxu0 %v119
    %163 = vmatpush1.msra.mxu0 %v118
    %164 = vmatprep.subr.mxu0 %v121
    %165 = vmatpush1.msra.mxu0 %v120
    %166 = vmatprep.subr.mxu0 0.0
    %167 = vmatpush1.msra.mxu0 0.0
    %168 = vmatprep.subr.mxu0 0.0
    %169 = vmatpush1.msra.mxu0 0.0
    %170 = vmatprep.subr.mxu0 0.0
    %171 = vmatpush1.msra.mxu0 0.0
    %172 = vmatprep.subr.mxu0 0.0
    %173 = vmatpush1.msra.mxu0 0.0
    %174 = vmatprep.subr.mxu0 0.0
    %175 = vmatpush1.msra.mxu0 0.0
    %176 = vmatprep.subr.mxu0 0.0
    %177 = vmatpush1.msra.mxu0 0.0
    %178 = vmatprep.subr.mxu0 0.0
    %179 = vmatpush1.msra.mxu0 0.0
    %180 = vmatprep.subr.mxu0 0.0
    %181 = vmatpush1.msra.mxu0 0.0
    %182 = vmatprep.subr.mxu0 0.0
    %183 = vmatpush1.msra.mxu0 0.0
    %184 = vmatprep.subr.mxu0 0.0
    %185 = vmatpush1.msra.mxu0 0.0
    %186 = vmatprep.subr.mxu0 0.0
    %187 = vmatpush1.msra.mxu0 0.0
    %188 = vmatprep.subr.mxu0 0.0
    %189 = vmatpush1.msra.mxu0 0.0
    %190 = vmatprep.subr.mxu0 0.0
    %191 = vmatpush1.msra.mxu0 0.0
    %192 = vmatprep.subr.mxu0 0.0
    %193 = vmatpush1.msra.mxu0 0.0
    %194 = vmatprep.subr.mxu0 0.0
    %195 = vmatpush1.msra.mxu0 0.0
    %196 = vmatprep.subr.mxu0 0.0
    %197 = vmatpush1.msra.mxu0 0.0
    %198 = vmatprep.mubr.f32.mxu0 0.0
    %199 = vmatmul.mubr.f32.gmra.mrb[0].mxu0 %v82
    %v200 = vpop.f32.mrb[0].mxu0
    %v201 = vadd.f32 %v127, %v200
    %v202 = vpop.f32.mrb[0].mxu0
    %v203 = vadd.f32 %v131, %v202
    %204 = vmatprep.mubr.f32.mxu0 0.0
    %205 = vmatmul.mubr.f32.gmra.mrb[0].mxu0 %v83
    %v206 = vpop.f32.mrb[0].mxu0
    %v207 = vadd.f32 %v127, %v206
    %v208 = vpop.f32.mrb[0].mxu0
    %v209 = vadd.f32 %v131, %v208
    %210 = vmatprep.mubr.f32.mxu0 0.0
    %211 = vmatmul.mubr.f32.gmra.mrb[0].mxu0 %v84
    %v212 = vpop.f32.mrb[0].mxu0
    %v213 = vadd.f32 %v127, %v212
    %v214 = vpop.f32.mrb[0].mxu0
    %v215 = vadd.f32 %v131, %v214
    %216 = vmatprep.mubr.f32.mxu0 0.0
    %217 = vmatmul.mubr.f32.gmra.mrb[0].mxu0 %v85
    %v218 = vpop.f32.mrb[0].mxu0
    %v219 = vadd.f32 %v127, %v218
    %v220 = vpop.f32.mrb[0].mxu0
    %v221 = vadd.f32 %v131, %v220
    %222 = vmatprep.mubr.f32.mxu0 0.0
    %223 = vmatmul.mubr.f32.gmra.mrb[0].mxu0 %v86
    %v224 = vpop.f32.mrb[0].mxu0
    %v225 = vadd.f32 %v127, %v224
    %v226 = vpop.f32.mrb[0].mxu0
    %v227 = vadd.f32 %v131, %v226
    %228 = vmatprep.mubr.f32.mxu0 0.0
    %229 = vmatmul.mubr.f32.gmra.mrb[0].mxu0 %v87
    %v230 = vpop.f32.mrb[0].mxu0
    %v231 = vadd.f32 %v127, %v230
    %v232 = vpop.f32.mrb[0].mxu0
    %v233 = vadd.f32 %v131, %v232
    %234 = vmatprep.mubr.f32.mxu0 0.0
    %235 = vmatmul.mubr.f32.gmra.mrb[0].mxu0 %v88
    %v236 = vpop.f32.mrb[0].mxu0
    %v237 = vadd.f32 %v127, %v236
    %v238 = vpop.f32.mrb[0].mxu0
    %v239 = vadd.f32 %v131, %v238
    %240 = vmatprep.mubr.f32.mxu0 0.0
    %241 = vmatmul.mubr.f32.gmra.mrb[0].mxu0 %v89
    %v242 = vpop.f32.mrb[0].mxu0
    %v243 = vadd.f32 %v127, %v242
    %v244 = vpop.f32.mrb[0].mxu0
    %v245 = vadd.f32 %v131, %v244
    %246 = vdwg.mxu0
    %v247 = vmax.f32 %v201, 0.0
    %v248 = vmax.f32 %v203, 0.0
    %v249 = vmax.f32 %v207, 0.0
    %v250 = vmax.f32 %v209, 0.0
    %v251 = vmax.f32 %v213, 0.0
    %v252 = vmax.f32 %v215, 0.0
    %v253 = vmax.f32 %v219, 0.0
    %v254 = vmax.f32 %v221, 0.0
    %v255 = vmax.f32 %v225, 0.0
    %v256 = vmax.f32 %v227, 0.0
    %v257 = vmax.f32 %v231, 0.0
    %v258 = vmax.f32 %v233, 0.0
    %v259 = vmax.f32 %v237, 0.0
    %v260 = vmax.f32 %v239, 0.0
    %v261 = vmax.f32 %v243, 0.0
    %v262 = vmax.f32 %v245, 0.0
    %v263 = vld [vmem:[#allocation7] sm:$0xff]
    %v264 = vld [vmem:[#allocation7 + $0x8] sm:$0xff]
    %v265 = vld [vmem:[#allocation7 + $0x10] sm:$0xff]
    %v266 = vld [vmem:[#allocation7 + $0x18] sm:$0xff]
    %v267 = vld [vmem:[#allocation7 + $0x20] sm:$0xff]
    %v268 = vld [vmem:[#allocation7 + $0x28] sm:$0xff]
    %v269 = vld [vmem:[#allocation7 + $0x30] sm:$0xff]
    %v270 = vld [vmem:[#allocation7 + $0x38] sm:$0xff]
    %v271 = vld [vmem:[#allocation7 + $0x40] sm:$0xff]
    %v272 = vld [vmem:[#allocation7 + $0x48] sm:$0xff]
    %v273 = vld [vmem:[#allocation7 + $0x50] sm:$0xff]
    %v274 = vld [vmem:[#allocation7 + $0x58] sm:$0xff]
    %v275 = vld [vmem:[#allocation7 + $0x60] sm:$0xff]
    %v276 = vld [vmem:[#allocation7 + $0x68] sm:$0xff]
    %v277 = vld [vmem:[#allocation7 + $0x70] sm:$0xff]
    %v278 = vld [vmem:[#allocation7 + $0x78] sm:$0xff]
    %v279 = vld [vmem:[#allocation7 + $0x80] sm:$0xff]
    %v280 = vld [vmem:[#allocation7 + $0x88] sm:$0xff]
    %v281 = vld [vmem:[#allocation7 + $0x90] sm:$0xff]
    %v282 = vld [vmem:[#allocation7 + $0x98] sm:$0xff]
    %v283 = vld [vmem:[#allocation7 + $0xa0] sm:$0xff]
    %v284 = vld [vmem:[#allocation7 + $0xa8] sm:$0xff]
    %v285 = vld [vmem:[#allocation7 + $0xb0] sm:$0xff]
    %v286 = vld [vmem:[#allocation7 + $0xb8] sm:$0xff]
    %v287 = vld [vmem:[#allocation7 + $0xc0] sm:$0xff]
    %v288 = vld [vmem:[#allocation7 + $0xc8] sm:$0xff]
    %v289 = vld [vmem:[#allocation7 + $0xd0] sm:$0xff]
    %v290 = vld [vmem:[#allocation7 + $0xd8] sm:$0xff]
    %v291 = vld [vmem:[#allocation7 + $0xe0] sm:$0xff]
    %v292 = vld [vmem:[#allocation7 + $0xe8] sm:$0xff]
    %v293 = vld [vmem:[#allocation7 + $0xf0] sm:$0xff]
    %v294 = vld [vmem:[#allocation7 + $0xf8] sm:$0xff]
    %v295 = vld [vmem:[#allocation7 + $0x100] sm:$0xff]
    %v296 = vld [vmem:[#allocation7 + $0x108] sm:$0xff]
    %v297 = vld [vmem:[#allocation7 + $0x110] sm:$0xff]
    %v298 = vld [vmem:[#allocation7 + $0x118] sm:$0xff]
    %v299 = vld [vmem:[#allocation7 + $0x120] sm:$0xff]
    %v300 = vld [vmem:[#allocation7 + $0x128] sm:$0xff]
    %v301 = vld [vmem:[#allocation7 + $0x130] sm:$0xff]
    %v302 = vld [vmem:[#allocation7 + $0x138] sm:$0xff]
    %v303 = vld [vmem:[#allocation7 + $0x140] sm:$0xff]
    %v304 = vld [vmem:[#allocation7 + $0x148] sm:$0xff]
    %v305 = vld [vmem:[#allocation7 + $0x150] sm:$0xff]
    %v306 = vld [vmem:[#allocation7 + $0x158] sm:$0xff]
    %v307 = vld [vmem:[#allocation7 + $0x160] sm:$0xff]
    %v308 = vld [vmem:[#allocation7 + $0x168] sm:$0xff]
    %v309 = vld [vmem:[#allocation7 + $0x170] sm:$0xff]
    %v310 = vld [vmem:[#allocation7 + $0x178] sm:$0xff]
    %v311 = vld [vmem:[#allocation7 + $0x180] sm:$0xff]
    %v312 = vld [vmem:[#allocation7 + $0x188] sm:$0xff]
    %v313 = vld [vmem:[#allocation7 + $0x190] sm:$0xff]
    %v314 = vld [vmem:[#allocation7 + $0x198] sm:$0xff]
    %v315 = vld [vmem:[#allocation7 + $0x1a0] sm:$0xff]
    %v316 = vld [vmem:[#allocation7 + $0x1a8] sm:$0xff]
    %v317 = vld [vmem:[#allocation7 + $0x1b0] sm:$0xff]
    %v318 = vld [vmem:[#allocation7 + $0x1b8] sm:$0xff]
    %v319 = vld [vmem:[#allocation7 + $0x1c0] sm:$0xff]
    %v320 = vld [vmem:[#allocation7 + $0x1c8] sm:$0xff]
    %v321 = vld [vmem:[#allocation7 + $0x1d0] sm:$0xff]
    %v322 = vld [vmem:[#allocation7 + $0x1d8] sm:$0xff]
    %v323 = vld [vmem:[#allocation7 + $0x1e0] sm:$0xff]
    %v324 = vld [vmem:[#allocation7 + $0x1e8] sm:$0xff]
    %v325 = vld [vmem:[#allocation7 + $0x1f0] sm:$0xff]
    %v326 = vld [vmem:[#allocation7 + $0x1f8] sm:$0xff]
    %v327 = vld [vmem:[%s4] sm:$0x3]
    %v329 = vlaneseq
    %v330 = vshrl.u32 %v329, 7
    %v331 = vsub.s32 0, %v330
    %v332 = vrot.slane %v327, %v331
    %v333 = vlaneseq
    %v334 = vshrl.u32 %v333, 7
    %v335 = vsub.s32 1, %v334
    %v336 = vrot.slane %v327, %v335
    %339 = vmatprep.subr.mxu0 %v264
    %340 = vmatpush1.msra.mxu0 %v263
    %341 = vmatprep.subr.mxu0 %v266
    %342 = vmatpush1.msra.mxu0 %v265
    %343 = vmatprep.subr.mxu0 %v268
    %344 = vmatpush1.msra.mxu0 %v267
    %345 = vmatprep.subr.mxu0 %v270
    %346 = vmatpush1.msra.mxu0 %v269
    %347 = vmatprep.subr.mxu0 %v272
    %348 = vmatpush1.msra.mxu0 %v271
    %349 = vmatprep.subr.mxu0 %v274
    %350 = vmatpush1.msra.mxu0 %v273
    %351 = vmatprep.subr.mxu0 %v276
    %352 = vmatpush1.msra.mxu0 %v275
    %353 = vmatprep.subr.mxu0 %v278
    %354 = vmatpush1.msra.mxu0 %v277
    %355 = vmatprep.subr.mxu0 %v280
    %356 = vmatpush1.msra.mxu0 %v279
    %357 = vmatprep.subr.mxu0 %v282
    %358 = vmatpush1.msra.mxu0 %v281
    %359 = vmatprep.subr.mxu0 %v284
    %360 = vmatpush1.msra.mxu0 %v283
    %361 = vmatprep.subr.mxu0 %v286
    %362 = vmatpush1.msra.mxu0 %v285
    %363 = vmatprep.subr.mxu0 %v288
    %364 = vmatpush1.msra.mxu0 %v287
    %365 = vmatprep.subr.mxu0 %v290
    %366 = vmatpush1.msra.mxu0 %v289
    %367 = vmatprep.subr.mxu0 %v292
    %368 = vmatpush1.msra.mxu0 %v291
    %369 = vmatprep.subr.mxu0 %v294
    %370 = vmatpush1.msra.mxu0 %v293
    %371 = vmatprep.subr.mxu0 %v296
    %372 = vmatpush1.msra.mxu0 %v295
    %373 = vmatprep.subr.mxu0 %v298
    %374 = vmatpush1.msra.mxu0 %v297
    %375 = vmatprep.subr.mxu0 %v300
    %376 = vmatpush1.msra.mxu0 %v299
    %377 = vmatprep.subr.mxu0 %v302
    %378 = vmatpush1.msra.mxu0 %v301
    %379 = vmatprep.subr.mxu0 %v304
    %380 = vmatpush1.msra.mxu0 %v303
    %381 = vmatprep.subr.mxu0 %v306
    %382 = vmatpush1.msra.mxu0 %v305
    %383 = vmatprep.subr.mxu0 %v308
    %384 = vmatpush1.msra.mxu0 %v307
    %385 = vmatprep.subr.mxu0 %v310
    %386 = vmatpush1.msra.mxu0 %v309
    %387 = vmatprep.subr.mxu0 %v312
    %388 = vmatpush1.msra.mxu0 %v311
    %389 = vmatprep.subr.mxu0 %v314
    %390 = vmatpush1.msra.mxu0 %v313
    %391 = vmatprep.subr.mxu0 %v316
    %392 = vmatpush1.msra.mxu0 %v315
    %393 = vmatprep.subr.mxu0 %v318
    %394 = vmatpush1.msra.mxu0 %v317
    %395 = vmatprep.subr.mxu0 %v320
    %396 = vmatpush1.msra.mxu0 %v319
    %397 = vmatprep.subr.mxu0 %v322
    %398 = vmatpush1.msra.mxu0 %v321
    %399 = vmatprep.subr.mxu0 %v324
    %400 = vmatpush1.msra.mxu0 %v323
    %401 = vmatprep.subr.mxu0 %v326
    %402 = vmatpush1.msra.mxu0 %v325
    %403 = vmatprep.mubr.f32.mxu0 %v248
    %404 = vmatmul.mubr.f32.gmra.mrb[0].mxu0 %v247
    %v405 = vpop.f32.mrb[0].mxu0
    %v406 = vadd.f32 %v332, %v405
    %v407 = vpop.f32.mrb[0].mxu0
    %v408 = vadd.f32 %v336, %v407
    %409 = vmatprep.mubr.f32.mxu0 %v250
    %410 = vmatmul.mubr.f32.gmra.mrb[0].mxu0 %v249
    %v411 = vpop.f32.mrb[0].mxu0
    %v412 = vadd.f32 %v332, %v411
    %v413 = vpop.f32.mrb[0].mxu0
    %v414 = vadd.f32 %v336, %v413
    %415 = vmatprep.mubr.f32.mxu0 %v252
    %416 = vmatmul.mubr.f32.gmra.mrb[0].mxu0 %v251
    %v417 = vpop.f32.mrb[0].mxu0
    %v418 = vadd.f32 %v332, %v417
    %v419 = vpop.f32.mrb[0].mxu0
    %v420 = vadd.f32 %v336, %v419
    %421 = vmatprep.mubr.f32.mxu0 %v254
    %422 = vmatmul.mubr.f32.gmra.mrb[0].mxu0 %v253
    %v423 = vpop.f32.mrb[0].mxu0
    %v424 = vadd.f32 %v332, %v423
    %v425 = vpop.f32.mrb[0].mxu0
    %v426 = vadd.f32 %v336, %v425
    %427 = vmatprep.mubr.f32.mxu0 %v256
    %428 = vmatmul.mubr.f32.gmra.mrb[0].mxu0 %v255
    %v429 = vpop.f32.mrb[0].mxu0
    %v430 = vadd.f32 %v332, %v429
    %v431 = vpop.f32.mrb[0].mxu0
    %v432 = vadd.f32 %v336, %v431
    %433 = vmatprep.mubr.f32.mxu0 %v258
    %434 = vmatmul.mubr.f32.gmra.mrb[0].mxu0 %v257
    %v435 = vpop.f32.mrb[0].mxu0
    %v436 = vadd.f32 %v332, %v435
    %v437 = vpop.f32.mrb[0].mxu0
    %v438 = vadd.f32 %v336, %v437
    %439 = vmatprep.mubr.f32.mxu0 %v260
    %440 = vmatmul.mubr.f32.gmra.mrb[0].mxu0 %v259
    %v441 = vpop.f32.mrb[0].mxu0
    %v442 = vadd.f32 %v332, %v441
    %v443 = vpop.f32.mrb[0].mxu0
    %v444 = vadd.f32 %v336, %v443
    %445 = vmatprep.mubr.f32.mxu0 %v262
    %446 = vmatmul.mubr.f32.gmra.mrb[0].mxu0 %v261
    %v447 = vpop.f32.mrb[0].mxu0
    %v448 = vadd.f32 %v332, %v447
    %v449 = vpop.f32.mrb[0].mxu0
    %v450 = vadd.f32 %v336, %v449
    %451 = vdwg.mxu0
    %v452 = vmax.f32 %v406, 0.0
    %v453 = vmax.f32 %v408, 0.0
    %v454 = vmax.f32 %v412, 0.0
    %v455 = vmax.f32 %v414, 0.0
    %v456 = vmax.f32 %v418, 0.0
    %v457 = vmax.f32 %v420, 0.0
    %v458 = vmax.f32 %v424, 0.0
    %v459 = vmax.f32 %v426, 0.0
    %v460 = vmax.f32 %v430, 0.0
    %v461 = vmax.f32 %v432, 0.0
    %v462 = vmax.f32 %v436, 0.0
    %v463 = vmax.f32 %v438, 0.0
    %v464 = vmax.f32 %v442, 0.0
    %v465 = vmax.f32 %v444, 0.0
    %v466 = vmax.f32 %v448, 0.0
    %v467 = vmax.f32 %v450, 0.0
    %v468 = vld [vmem:[#allocation8] sm:$0xff]
    %v469 = vld [vmem:[#allocation8 + $0x8] sm:$0xff]
    %v470 = vld [vmem:[#allocation8 + $0x10] sm:$0xff]
    %v471 = vld [vmem:[#allocation8 + $0x18] sm:$0xff]
    %v472 = vld [vmem:[#allocation8 + $0x20] sm:$0xff]
    %v473 = vld [vmem:[#allocation8 + $0x28] sm:$0xff]
    %v474 = vld [vmem:[#allocation8 + $0x30] sm:$0xff]
    %v475 = vld [vmem:[#allocation8 + $0x38] sm:$0xff]
    %v476 = vld [vmem:[#allocation8 + $0x40] sm:$0xff]
    %v477 = vld [vmem:[#allocation8 + $0x48] sm:$0xff]
    %v478 = vld [vmem:[#allocation8 + $0x50] sm:$0xff]
    %v479 = vld [vmem:[#allocation8 + $0x58] sm:$0xff]
    %v480 = vld [vmem:[#allocation8 + $0x60] sm:$0xff]
    %v481 = vld [vmem:[#allocation8 + $0x68] sm:$0xff]
    %v482 = vld [vmem:[#allocation8 + $0x70] sm:$0xff]
    %v483 = vld [vmem:[#allocation8 + $0x78] sm:$0xff]
    %v484 = vld [vmem:[#allocation8 + $0x80] sm:$0xff]
    %v485 = vld [vmem:[#allocation8 + $0x88] sm:$0xff]
    %v486 = vld [vmem:[#allocation8 + $0x90] sm:$0xff]
    %v487 = vld [vmem:[#allocation8 + $0x98] sm:$0xff]
    %v488 = vld [vmem:[#allocation8 + $0xa0] sm:$0xff]
    %v489 = vld [vmem:[#allocation8 + $0xa8] sm:$0xff]
    %v490 = vld [vmem:[#allocation8 + $0xb0] sm:$0xff]
    %v491 = vld [vmem:[#allocation8 + $0xb8] sm:$0xff]
    %v492 = vld [vmem:[#allocation8 + $0xc0] sm:$0xff]
    %v493 = vld [vmem:[#allocation8 + $0xc8] sm:$0xff]
    %v494 = vld [vmem:[#allocation8 + $0xd0] sm:$0xff]
    %v495 = vld [vmem:[#allocation8 + $0xd8] sm:$0xff]
    %v496 = vld [vmem:[#allocation8 + $0xe0] sm:$0xff]
    %v497 = vld [vmem:[#allocation8 + $0xe8] sm:$0xff]
    %v498 = vld [vmem:[#allocation8 + $0xf0] sm:$0xff]
    %v499 = vld [vmem:[#allocation8 + $0xf8] sm:$0xff]
    %v500 = vld [vmem:[%s6] sm:$0x1]
    %v502 = vlaneseq
    %v503 = vshrl.u32 %v502, 7
    %v504 = vsub.s32 0, %v503
    %v505 = vrot.slane %v500, %v504
    %507 = vmatprep.subr.mxu0 0.0
    %508 = vmatpush1.msra.mxu0 %v468
    %509 = vmatprep.subr.mxu0 0.0
    %510 = vmatpush1.msra.mxu0 %v469
    %511 = vmatprep.subr.mxu0 0.0
    %512 = vmatpush1.msra.mxu0 %v470
    %513 = vmatprep.subr.mxu0 0.0
    %514 = vmatpush1.msra.mxu0 %v471
    %515 = vmatprep.subr.mxu0 0.0
    %516 = vmatpush1.msra.mxu0 %v472
    %517 = vmatprep.subr.mxu0 0.0
    %518 = vmatpush1.msra.mxu0 %v473
    %519 = vmatprep.subr.mxu0 0.0
    %520 = vmatpush1.msra.mxu0 %v474
    %521 = vmatprep.subr.mxu0 0.0
    %522 = vmatpush1.msra.mxu0 %v475
    %523 = vmatprep.subr.mxu0 0.0
    %524 = vmatpush1.msra.mxu0 %v476
    %525 = vmatprep.subr.mxu0 0.0
    %526 = vmatpush1.msra.mxu0 %v477
    %527 = vmatprep.subr.mxu0 0.0
    %528 = vmatpush1.msra.mxu0 %v478
    %529 = vmatprep.subr.mxu0 0.0
    %530 = vmatpush1.msra.mxu0 %v479
    %531 = vmatprep.subr.mxu0 0.0
    %532 = vmatpush1.msra.mxu0 %v480
    %533 = vmatprep.subr.mxu0 0.0
    %534 = vmatpush1.msra.mxu0 %v481
    %535 = vmatprep.subr.mxu0 0.0
    %536 = vmatpush1.msra.mxu0 %v482
    %537 = vmatprep.subr.mxu0 0.0
    %538 = vmatpush1.msra.mxu0 %v483
    %539 = vmatprep.subr.mxu0 0.0
    %540 = vmatpush1.msra.mxu0 %v484
    %541 = vmatprep.subr.mxu0 0.0
    %542 = vmatpush1.msra.mxu0 %v485
    %543 = vmatprep.subr.mxu0 0.0
    %544 = vmatpush1.msra.mxu0 %v486
    %545 = vmatprep.subr.mxu0 0.0
    %546 = vmatpush1.msra.mxu0 %v487
    %547 = vmatprep.subr.mxu0 0.0
    %548 = vmatpush1.msra.mxu0 %v488
    %549 = vmatprep.subr.mxu0 0.0
    %550 = vmatpush1.msra.mxu0 %v489
    %551 = vmatprep.subr.mxu0 0.0
    %552 = vmatpush1.msra.mxu0 %v490
    %553 = vmatprep.subr.mxu0 0.0
    %554 = vmatpush1.msra.mxu0 %v491
    %555 = vmatprep.subr.mxu0 0.0
    %556 = vmatpush1.msra.mxu0 %v492
    %557 = vmatprep.subr.mxu0 0.0
    %558 = vmatpush1.msra.mxu0 %v493
    %559 = vmatprep.subr.mxu0 0.0
    %560 = vmatpush1.msra.mxu0 %v494
    %561 = vmatprep.subr.mxu0 0.0
    %562 = vmatpush1.msra.mxu0 %v495
    %563 = vmatprep.subr.mxu0 0.0
    %564 = vmatpush1.msra.mxu0 %v496
    %565 = vmatprep.subr.mxu0 0.0
    %566 = vmatpush1.msra.mxu0 %v497
    %567 = vmatprep.subr.mxu0 0.0
    %568 = vmatpush1.msra.mxu0 %v498
    %569 = vmatprep.subr.mxu0 0.0
    %570 = vmatpush1.msra.mxu0 %v499
    %571 = vmatprep.mubr.f32.mxu0 %v453
    %572 = vmatmul.mubr.f32.gmra.mrb[0].mxu0 %v452
    %v573 = vpop.f32.mrb[0].mxu0
    %v574 = vadd.f32 %v505, %v573
    %v575 = vpop.f32.mrb[0].mxu0
    %576 = vmatprep.mubr.f32.mxu0 %v455
    %577 = vmatmul.mubr.f32.gmra.mrb[0].mxu0 %v454
    %v578 = vpop.f32.mrb[0].mxu0
    %v579 = vadd.f32 %v505, %v578
    %v580 = vpop.f32.mrb[0].mxu0
    %581 = vmatprep.mubr.f32.mxu0 %v457
    %582 = vmatmul.mubr.f32.gmra.mrb[0].mxu0 %v456
    %v583 = vpop.f32.mrb[0].mxu0
    %v584 = vadd.f32 %v505, %v583
    %v585 = vpop.f32.mrb[0].mxu0
    %586 = vmatprep.mubr.f32.mxu0 %v459
    %587 = vmatmul.mubr.f32.gmra.mrb[0].mxu0 %v458
    %v588 = vpop.f32.mrb[0].mxu0
    %v589 = vadd.f32 %v505, %v588
    %v590 = vpop.f32.mrb[0].mxu0
    %591 = vmatprep.mubr.f32.mxu0 %v461
    %592 = vmatmul.mubr.f32.gmra.mrb[0].mxu0 %v460
    %v593 = vpop.f32.mrb[0].mxu0
    %v594 = vadd.f32 %v505, %v593
    %v595 = vpop.f32.mrb[0].mxu0
    %596 = vmatprep.mubr.f32.mxu0 %v463
    %597 = vmatmul.mubr.f32.gmra.mrb[0].mxu0 %v462
    %v598 = vpop.f32.mrb[0].mxu0
    %v599 = vadd.f32 %v505, %v598
    %v600 = vpop.f32.mrb[0].mxu0
    %601 = vmatprep.mubr.f32.mxu0 %v465
    %602 = vmatmul.mubr.f32.gmra.mrb[0].mxu0 %v464
    %v603 = vpop.f32.mrb[0].mxu0
    %v604 = vadd.f32 %v505, %v603
    %v605 = vpop.f32.mrb[0].mxu0
    %606 = vmatprep.mubr.f32.mxu0 %v467
    %607 = vmatmul.mubr.f32.gmra.mrb[0].mxu0 %v466
    %v608 = vpop.f32.mrb[0].mxu0
    %v609 = vadd.f32 %v505, %v608
    %v610 = vpop.f32.mrb[0].mxu0
    %611 = vdwg.mxu0
    %v612 = vlaneseq
    %v613 = vand.u32 %v612, 127
    %v614 = vmax.f32 %v574, -20.0
    %v615 = vmax.f32 %v579, -20.0
    %v616 = vmax.f32 %v584, -20.0
    %v617 = vmax.f32 %v589, -20.0
    %v618 = vmax.f32 %v594, -20.0
    %v619 = vmax.f32 %v599, -20.0
    %v620 = vmax.f32 %v604, -20.0
    %v621 = vmax.f32 %v609, -20.0
    %v622 = vmin.f32 %v614, 2.0
    %v623 = vmin.f32 %v615, 2.0
    %v624 = vmin.f32 %v616, 2.0
    %v625 = vmin.f32 %v617, 2.0
    %v626 = vmin.f32 %v618, 2.0
    %v627 = vmin.f32 %v619, 2.0
    %v628 = vmin.f32 %v620, 2.0
    %v629 = vmin.f32 %v621, 2.0
    %v630 = vmul.f32 %v622, 1.442695
    %v631 = vpow.pop %v630
    %v632 = vmul.f32 %v623, 1.442695
    %v633 = vpow.pop %v632
    %v634 = vmul.f32 %v624, 1.442695
    %v635 = vpow.pop %v634
    %v636 = vmul.f32 %v625, 1.442695
    %v637 = vpow.pop %v636
    %v638 = vmul.f32 %v626, 1.442695
    %v639 = vpow.pop %v638
    %v640 = vmul.f32 %v627, 1.442695
    %v641 = vpow.pop %v640
    %v642 = vmul.f32 %v628, 1.442695
    %v643 = vpow.pop %v642
    %v644 = vmul.f32 %v629, 1.442695
    %v645 = vpow.pop %v644
    %vm646 = vcmp.lt.s32.totalorder %v613, 3
    %v647 = vsel %vm646, %v574, %v631
    %v648 = vsel %vm646, %v579, %v633
    %v649 = vsel %vm646, %v584, %v635
    %v650 = vsel %vm646, %v589, %v637
    %v651 = vsel %vm646, %v594, %v639
    %v652 = vsel %vm646, %v599, %v641
    %v653 = vsel %vm646, %v604, %v643
    %v654 = vsel %vm646, %v609, %v645
    %655 = vst [vmem:[#allocation10] sm:$0xff] %v647
    %656 = vst [vmem:[#allocation10 + $0x8] sm:$0xff] %v648
    %657 = vst [vmem:[#allocation10 + $0x10] sm:$0xff] %v649
    %658 = vst [vmem:[#allocation10 + $0x18] sm:$0xff] %v650
    %659 = vst [vmem:[#allocation10 + $0x20] sm:$0xff] %v651
    %660 = vst [vmem:[#allocation10 + $0x28] sm:$0xff] %v652
    %661 = vst [vmem:[#allocation10 + $0x30] sm:$0xff] %v653
    %662 = vst [vmem:[#allocation10 + $0x38] sm:$0xff] %v654
    // Predicated region
    $region46: #{tpu_custom_call.1} parent=1 // pred_check
      _
    $region47: #{tpu_custom_call.1} parent=1 // pred_check_branch
      %664 = sbr.rel (0) target = $region49
    $region48: #{tpu_custom_call.1} parent=1 // pred_region
      %s666 = ssub.s32 1024, 1024
      %667 = vsyncadd [#allocation4], %s666
      %s668 = sshll.u32 [#allocation10], 4
      %s669 = int_to_ptr.vmem [resolvable:$true] %s668
      %674 = dma.vmem_to_hbm [thread:$0]  %s669, 1024, %s7, [#allocation4], 128, 128, 8
    $region49: #{tpu_custom_call.1} parent=1 // pred_fallthru
      _
    // Predicated region
    $region50: #{tpu_custom_call.1} parent=1 // pred_check
      _
    $region51: #{tpu_custom_call.1} parent=1 // pred_check_branch
      %676 = sbr.rel (0) target = $region53
    $region52: #{tpu_custom_call.1} parent=1 // pred_region
      %677 = dma.done [#allocation4], 1024
    $region53: #{tpu_custom_call.1} parent=1 // pred_fallthru
      _
    %678 = vsyncpa [#allocation3], 1
    %679 = vsyncpa [#allocation6], 1
    %680 = vsyncpa [#allocation9], 1
    %681 = vsyncpa [#allocation4], 1

</llo_original>
